<compile_context>
chip_gen: v5e
topology: v5e:2x2
jax: 0.10.0
libtpu: 0.0.40
codegen_flags: <defaults>
</compile_context>

<pallas_src>
import functools

import jax
import jax.numpy as jnp
import numpy as np
from jax.experimental import pallas as pl
from jax.experimental.pallas import tpu as pltpu  # noqa: F401  (TPU backend import)


def _rup(n, m):
    return -(-n // m) * m


# ----------------------------- Pallas kernel -------------------------------

def generator_kernel(x_ref, wb_ref, s_ref, out_ref, *,
                     nzg, nzp, cinp1, bias_col, r_mid, r_kp, layers):
    """Whole Generator forward, batch folded into the lane axis.

    x_ref  : (nzg+1, B*L)  f32   rows 0..nzg-1 = zg, row nzg = time index
    wb_ref : (Rw, 256)     f32   weights in cols [0:128), bias in col `bias_col`
    s_ref  : (Rs, 128)     bf16  0/1 scatter matrices (block-diag over batch)
    out_ref: (Coutp4, 128) f32   lane-dense padded output
    """
    n_lanes = x_ref.shape[1]
    x = x_ref[0:nzg, :]                                    # (nzg, B*L)
    t = x_ref[nzg:nzg + 1, :]                              # (1,   B*L)

    # zp_mid: 1x1 conv + ReLU
    wmid = wb_ref[r_mid:r_mid + nzg, 0:nzg]
    bmid = wb_ref[r_mid:r_mid + nzg, bias_col:bias_col + 1]
    mid = jnp.maximum(
        jnp.dot(wmid, x, preferred_element_type=jnp.float32) + bmid, 0.0)

    # fused k_gen / phi_gen 1x1 convs: rows [0:nzp]=k, [nzp:2*nzp]=phi
    wkp = wb_ref[r_kp:r_kp + 2 * nzp, 0:nzg]
    bkp = wb_ref[r_kp:r_kp + 2 * nzp, bias_col:bias_col + 1]
    kphi = jnp.dot(wkp, mid, preferred_element_type=jnp.float32) + bkp
    zp = jnp.sin(kphi[0:nzp] * t + kphi[nzp:2 * nzp])

    # z = cat([zg, zp], channels), zero-padded to cinp1 rows (x8 sublane tiling)
    parts = [x, zp]
    npad = cinp1 - nzg - nzp
    if npad:
        parts.append(jnp.zeros((npad, n_lanes), jnp.float32))
    h = jnp.concatenate(parts, axis=0)                     # (cinp1, B*L)

    # Decoder: ConvT(4,1)+ReLU, ConvT(4,2)+ReLU, ConvT(4,1)+ReLU, ConvT(4,2)
    for (w_row, coutp, cinp, ntap, s_base, s_stride, blin, blout, relu) in layers:
        hks = []
        for k in range(ntap):
            r0 = s_base + k * s_stride
            sk = s_ref[r0:r0 + blin, 0:blout].astype(jnp.float32)
            hks.append(jnp.dot(h, sk, preferred_element_type=jnp.float32))
        hstk = jnp.concatenate(hks, axis=0)                # (ntap*cinp, blout)
        w = wb_ref[w_row:w_row + coutp, 0:ntap * cinp]
        b = wb_ref[w_row:w_row + coutp, bias_col:bias_col + 1]
        h = jnp.dot(w, hstk, preferred_element_type=jnp.float32) + b
        if relu:
            h = jnp.maximum(h, 0.0)

    # sigmoid(h) == 0.5*tanh(0.5*h)+0.5  (single EUP op, no exp overflow)
    out_ref[...] = 0.5 * jnp.tanh(0.5 * h) + 0.5


# ------------------------------ host wrapper --------------------------------

def make_generator(params, B, L):
    """One-time host prep (cached).  Returns jitted forward(zg)->(B,15,Lout)."""
    K = 4
    nzg = int(params["wmid"].shape[0])
    nzp = int(params["wk"].shape[0])
    c_final = int(params["w4"].shape[1])
    strides = (1, 2, 1, 2)

    w_np = [np.asarray(params[f"w{i}"], np.float32) for i in (1, 2, 3, 4)]
    b_np = [np.asarray(params[f"b{i}"], np.float32) for i in (1, 2, 3, 4)]

    # channel / length chains (channels padded to x8)
    cin_chain, cout_chain, lin_chain, lout_chain = [], [], [], []
    cinp, lin = _rup(nzg + nzp, 8), L
    for i in range(4):
        _, cout, _ = w_np[i].shape
        cin_chain.append(cinp)
        cout_chain.append(_rup(cout, 8))
        lin_chain.append(lin)
        lout_chain.append((lin - 1) * strides[i] + K)
        cinp, lin = cout_chain[-1], lout_chain[-1]
    L_out = lout_chain[-1]

    # ---- weight+bias slab (f32): weights in cols [0:w_width), bias column --
    r_mid = 0
    r_kp = _rup(nzg, 8)
    w_rows = [r_kp + _rup(2 * nzp, 8)]
    for i in range(1, 4):
        w_rows.append(w_rows[-1] + cout_chain[i - 1])
    total_rows = _rup(w_rows[-1] + cout_chain[-1], 8)
    w_width = _rup(max(nzg, max(K * c for c in cin_chain)), 128)
    bias_col = w_width
    wb = np.zeros((total_rows, w_width + 128), np.float32)

    wb[r_mid:r_mid + nzg, 0:nzg] = np.asarray(params["wmid"], np.float32)
    wb[r_mid:r_mid + nzg, bias_col] = np.asarray(params["bmid"], np.float32)[:, 0]
    wb[r_kp:r_kp + nzp, 0:nzg] = np.asarray(params["wk"], np.float32)
    wb[r_kp:r_kp + nzp, bias_col] = np.asarray(params["bk"], np.float32)[:, 0]
    wb[r_kp + nzp:r_kp + 2 * nzp, 0:nzg] = np.asarray(params["wphi"], np.float32)
    wb[r_kp + nzp:r_kp + 2 * nzp, bias_col] = np.asarray(params["bphi"], np.float32)[:, 0]
    for i in range(4):
        _, cout, cin = w_np[i].shape
        r, cp = w_rows[i], cin_chain[i]
        for k in range(K):
            wb[r:r + cout, k * cp:k * cp + cin] = w_np[i][k]
        wb[r:r + cout, bias_col] = b_np[i][:, 0]

    # ---- scatter-matrix slab (exact 0/1, stored bf16) ----------------------
    s_strides_rows = [_rup(B * li, 8) for li in lin_chain]
    s_bases, base = [], 0
    for i in range(4):
        s_bases.append(base)
        base += K * s_strides_rows[i]
    blouts = [B * lo for lo in lout_chain]
    blouts[-1] = _rup(blouts[-1], 128)          # lane-dense final store
    s_width = max(blouts)
    S = np.zeros((_rup(base, 8), s_width), np.float32)
    for i in range(4):
        li, lo, st = lin_chain[i], lout_chain[i], strides[i]
        for k in range(K):
            r0 = s_bases[i] + k * s_strides_rows[i]
            for bb in range(B):
                for ii in range(li):
                    S[r0 + bb * li + ii, bb * lo + ii * st + k] = 1.0

    layers = tuple(
        (w_rows[i], cout_chain[i], cin_chain[i], K, s_bases[i],
         s_strides_rows[i], B * lin_chain[i], blouts[i], i < 3)
        for i in range(4))

    wb_dev = jnp.asarray(wb)
    s_dev = jnp.asarray(S, dtype=jnp.bfloat16)
    t_row = jnp.asarray(np.tile(np.arange(L, dtype=np.float32), B)[None, :])

    kernel = functools.partial(
        generator_kernel, nzg=nzg, nzp=nzp, cinp1=cin_chain[0],
        bias_col=bias_col, r_mid=r_mid, r_kp=r_kp, layers=layers)
    pallas_fn = pl.pallas_call(
        kernel,
        out_shape=jax.ShapeDtypeStruct((cout_chain[-1], blouts[-1]), jnp.float32),
    )

    @jax.jit
    def forward(zg):
        # batch folded into lanes: x2d[c, b*L + l] = zg[b, c, l]
        x2d = jnp.transpose(zg, (1, 0, 2)).reshape(nzg, B * L)
        x_slab = jnp.concatenate([x2d, t_row], axis=0)
        out = pallas_fn(x_slab, wb_dev, s_dev)
        out = out[:c_final, :B * L_out].reshape(c_final, B, L_out)
        return jnp.transpose(out, (1, 0, 2))

    return forward


# ------------------------- deterministic parameters -------------------------

def init_params(key, nzg, nzp, ncf):
    c1, c2, c3, c_out = ncf << 2, ncf << 1, ncf, 15
    shapes = {
        "wmid": (nzg, nzg), "bmid": (nzg, 1),
        "wk": (nzp, nzg), "bk": (nzp, 1),
        "wphi": (nzp, nzg), "bphi": (nzp, 1),
        # ConvTranspose1d weights stored as (K, Cout, Cin)
        "w1": (4, c1, nzg + nzp), "b1": (c1, 1),
        "w2": (4, c2, c1), "b2": (c2, 1),
        "w3": (4, c3, c2), "b3": (c3, 1),
        "w4": (4, c_out, c3), "b4": (c_out, 1),
    }
    params = {}
    keys = jax.random.split(key, len(shapes))
    for (name, shp), k in zip(shapes.items(), keys):
        params[name] = (0.1 * jax.random.normal(k, shp)).astype(jnp.float32)
    return params


# ------------------------------ numpy reference -----------------------------

def ref_forward_np(zg, params):
    P = {k: np.asarray(v, np.float64) for k, v in params.items()}
    zg = np.asarray(zg, np.float64)
    B, nzg, L = zg.shape
    nzp = P["wk"].shape[0]

    def conv1x1(w, b, x):
        return np.einsum("oc,bcl->bol", w, x) + b[None, :, :]

    def convT(x, w, b, stride):
        Bx, Cin, Lin = x.shape
        K, Cout, _ = w.shape
        Lout = (Lin - 1) * stride + K
        out = np.zeros((Bx, Cout, Lout)) + b[None, :, :]
        for i in range(Lin):
            for k in range(K):
                out[:, :, i * stride + k] += np.einsum("oc,bc->bo", w[k], x[:, :, i])
        return out

    mid = np.maximum(conv1x1(P["wmid"], P["bmid"], zg), 0.0)
    k = conv1x1(P["wk"], P["bk"], mid)
    phi = conv1x1(P["wphi"], P["bphi"], mid)
    t = np.arange(L)[None, None, :] * np.ones((B, nzp, 1))
    zp = np.sin(k * t + phi)
    z = np.concatenate([zg, zp], axis=1)
    h = np.maximum(convT(z, P["w1"], P["b1"], 1), 0.0)
    h = np.maximum(convT(h, P["w2"], P["b2"], 2), 0.0)
    h = np.maximum(convT(h, P["w3"], P["b3"], 1), 0.0)
    h = convT(h, P["w4"], P["b4"], 2)
    return 1.0 / (1.0 + np.exp(-h))


# ----------------------------------- main -----------------------------------

if __name__ == "__main__":
    B, nzg, nzp, ncf, L = 2, 8, 4, 8, 8

    root = jax.random.PRNGKey(0)
    k_in, k_par = jax.random.split(root)
    zg = jax.random.normal(k_in, (B, nzg, L), dtype=jnp.float32)
    params = init_params(k_par, nzg, nzp, ncf)

    forward = make_generator(params, B, L)   # host-side constant prep, cached
    out = jax.block_until_ready(forward(zg))

    expected_L = 2 * ((2 * (L + 3) + 2) + 3) + 2
    assert out.shape == (B, 15, expected_L), out.shape

    ref = ref_forward_np(zg, params)
    np.testing.assert_allclose(np.asarray(out), ref, rtol=1e-4, atol=1e-5)

    print("KERNEL_OK")
</pallas_src>

<mosaic_0001>
module attributes {stable_mosaic.version = 11 : i64} {
  func.func @generator_kernel(%arg0: memref<9x16xf32, #tpu.memory_space<vmem>>, %arg1: memref<88x256xf32, #tpu.memory_space<vmem>>, %arg2: memref<576x128xbf16, #tpu.memory_space<vmem>>, %arg3: memref<16x128xf32, #tpu.memory_space<vmem>>) attributes {dimension_semantics = [], scalar_prefetch = 0 : i64, scratch_operands = 0 : i64, tpu.core_type = #tpu.core_type<tc>} {
    %c0 = arith.constant 0 : index
    %c0_0 = arith.constant 0 : index
    %0 = vector.load %arg0[%c0, %c0_0] : memref<9x16xf32, #tpu.memory_space<vmem>>, vector<8x16xf32>
    %c8 = arith.constant 8 : index
    %c0_1 = arith.constant 0 : index
    %1 = vector.load %arg0[%c8, %c0_1] : memref<9x16xf32, #tpu.memory_space<vmem>>, vector<1x16xf32>
    %c0_2 = arith.constant 0 : index
    %c0_3 = arith.constant 0 : index
    %2 = vector.load %arg1[%c0_2, %c0_3] : memref<88x256xf32, #tpu.memory_space<vmem>>, vector<8x8xf32>
    %c0_4 = arith.constant 0 : index
    %c128 = arith.constant 128 : index
    %3 = vector.load %arg1[%c0_4, %c128] : memref<88x256xf32, #tpu.memory_space<vmem>>, vector<8x1xf32>
    %cst = arith.constant dense<0.000000e+00> : vector<8x16xf32>
    %4 = tpu.matmul %2, %0, %cst {dimension_numbers = #tpu.dot_dimension_numbers<[1], [0], [0], [1], [0, 0, 1, 1], [], []>} : vector<8x8xf32>, vector<8x16xf32>, vector<8x16xf32> -> vector<8x16xf32>
    %5 = vector.broadcast %3 : vector<8x1xf32> to vector<8x16xf32>
    %6 = arith.addf %4, %5 : vector<8x16xf32>
    %cst_5 = arith.constant 0.000000e+00 : f32
    %7 = vector.broadcast %cst_5 : f32 to vector<8x16xf32>
    %8 = arith.maximumf %6, %7 : vector<8x16xf32>
    %c8_6 = arith.constant 8 : index
    %c0_7 = arith.constant 0 : index
    %9 = vector.load %arg1[%c8_6, %c0_7] : memref<88x256xf32, #tpu.memory_space<vmem>>, vector<8x8xf32>
    %c8_8 = arith.constant 8 : index
    %c128_9 = arith.constant 128 : index
    %10 = vector.load %arg1[%c8_8, %c128_9] : memref<88x256xf32, #tpu.memory_space<vmem>>, vector<8x1xf32>
    %cst_10 = arith.constant dense<0.000000e+00> : vector<8x16xf32>
    %11 = tpu.matmul %9, %8, %cst_10 {dimension_numbers = #tpu.dot_dimension_numbers<[1], [0], [0], [1], [0, 0, 1, 1], [], []>} : vector<8x8xf32>, vector<8x16xf32>, vector<8x16xf32> -> vector<8x16xf32>
    %12 = vector.broadcast %10 : vector<8x1xf32> to vector<8x16xf32>
    %13 = arith.addf %11, %12 : vector<8x16xf32>
    %14 = vector.extract_strided_slice %13 {offsets = [0, 0], sizes = [4, 16], strides = [1, 1]} : vector<8x16xf32> to vector<4x16xf32>
    %15 = vector.broadcast %1 : vector<1x16xf32> to vector<4x16xf32>
    %16 = arith.mulf %14, %15 : vector<4x16xf32>
    %17 = vector.extract_strided_slice %13 {offsets = [4, 0], sizes = [4, 16], strides = [1, 1]} : vector<8x16xf32> to vector<4x16xf32>
    %18 = arith.addf %16, %17 : vector<4x16xf32>
    %19 = math.sin %18 : vector<4x16xf32>
    %cst_11 = arith.constant 0.000000e+00 : f32
    %20 = vector.broadcast %cst_11 : f32 to vector<4x16xf32>
    %21 = tpu.concatenate %0, %19, %20 in 0 : vector<8x16xf32>, vector<4x16xf32>, vector<4x16xf32> -> vector<16x16xf32>
    %c0_12 = arith.constant 0 : index
    %c0_13 = arith.constant 0 : index
    %22 = vector.load %arg2[%c0_12, %c0_13] : memref<576x128xbf16, #tpu.memory_space<vmem>>, vector<16x22xbf16>
    %23 = arith.extf %22 : vector<16x22xbf16> to vector<16x22xf32>
    %cst_14 = arith.constant dense<0.000000e+00> : vector<16x22xf32>
    %24 = tpu.matmul %21, %23, %cst_14 {dimension_numbers = #tpu.dot_dimension_numbers<[1], [0], [0], [1], [0, 0, 1, 1], [], []>} : vector<16x16xf32>, vector<16x22xf32>, vector<16x22xf32> -> vector<16x22xf32>
    %c16 = arith.constant 16 : index
    %c0_15 = arith.constant 0 : index
    %25 = vector.load %arg2[%c16, %c0_15] : memref<576x128xbf16, #tpu.memory_space<vmem>>, vector<16x22xbf16>
    %26 = arith.extf %25 : vector<16x22xbf16> to vector<16x22xf32>
    %cst_16 = arith.constant dense<0.000000e+00> : vector<16x22xf32>
    %27 = tpu.matmul %21, %26, %cst_16 {dimension_numbers = #tpu.dot_dimension_numbers<[1], [0], [0], [1], [0, 0, 1, 1], [], []>} : vector<16x16xf32>, vector<16x22xf32>, vector<16x22xf32> -> vector<16x22xf32>
    %c32 = arith.constant 32 : index
    %c0_17 = arith.constant 0 : index
    %28 = vector.load %arg2[%c32, %c0_17] : memref<576x128xbf16, #tpu.memory_space<vmem>>, vector<16x22xbf16>
    %29 = arith.extf %28 : vector<16x22xbf16> to vector<16x22xf32>
    %cst_18 = arith.constant dense<0.000000e+00> : vector<16x22xf32>
    %30 = tpu.matmul %21, %29, %cst_18 {dimension_numbers = #tpu.dot_dimension_numbers<[1], [0], [0], [1], [0, 0, 1, 1], [], []>} : vector<16x16xf32>, vector<16x22xf32>, vector<16x22xf32> -> vector<16x22xf32>
    %c48 = arith.constant 48 : index
    %c0_19 = arith.constant 0 : index
    %31 = vector.load %arg2[%c48, %c0_19] : memref<576x128xbf16, #tpu.memory_space<vmem>>, vector<16x22xbf16>
    %32 = arith.extf %31 : vector<16x22xbf16> to vector<16x22xf32>
    %cst_20 = arith.constant dense<0.000000e+00> : vector<16x22xf32>
    %33 = tpu.matmul %21, %32, %cst_20 {dimension_numbers = #tpu.dot_dimension_numbers<[1], [0], [0], [1], [0, 0, 1, 1], [], []>} : vector<16x16xf32>, vector<16x22xf32>, vector<16x22xf32> -> vector<16x22xf32>
    %34 = tpu.concatenate %24, %27, %30, %33 in 0 : vector<16x22xf32>, vector<16x22xf32>, vector<16x22xf32>, vector<16x22xf32> -> vector<64x22xf32>
    %c16_21 = arith.constant 16 : index
    %c0_22 = arith.constant 0 : index
    %35 = vector.load %arg1[%c16_21, %c0_22] : memref<88x256xf32, #tpu.memory_space<vmem>>, vector<32x64xf32>
    %c16_23 = arith.constant 16 : index
    %c128_24 = arith.constant 128 : index
    %36 = vector.load %arg1[%c16_23, %c128_24] : memref<88x256xf32, #tpu.memory_space<vmem>>, vector<32x1xf32>
    %cst_25 = arith.constant dense<0.000000e+00> : vector<32x22xf32>
    %37 = tpu.matmul %35, %34, %cst_25 {dimension_numbers = #tpu.dot_dimension_numbers<[1], [0], [0], [1], [0, 0, 1, 1], [], []>} : vector<32x64xf32>, vector<64x22xf32>, vector<32x22xf32> -> vector<32x22xf32>
    %38 = vector.broadcast %36 : vector<32x1xf32> to vector<32x22xf32>
    %39 = arith.addf %37, %38 : vector<32x22xf32>
    %cst_26 = arith.constant 0.000000e+00 : f32
    %40 = vector.broadcast %cst_26 : f32 to vector<32x22xf32>
    %41 = arith.maximumf %39, %40 : vector<32x22xf32>
    %c64 = arith.constant 64 : index
    %c0_27 = arith.constant 0 : index
    %42 = vector.load %arg2[%c64, %c0_27] : memref<576x128xbf16, #tpu.memory_space<vmem>>, vector<22x48xbf16>
    %43 = arith.extf %42 : vector<22x48xbf16> to vector<22x48xf32>
    %cst_28 = arith.constant dense<0.000000e+00> : vector<32x48xf32>
    %44 = tpu.matmul %41, %43, %cst_28 {dimension_numbers = #tpu.dot_dimension_numbers<[1], [0], [0], [1], [0, 0, 1, 1], [], []>} : vector<32x22xf32>, vector<22x48xf32>, vector<32x48xf32> -> vector<32x48xf32>
    %c88 = arith.constant 88 : index
    %c0_29 = arith.constant 0 : index
    %45 = vector.load %arg2[%c88, %c0_29] : memref<576x128xbf16, #tpu.memory_space<vmem>>, vector<22x48xbf16>
    %46 = arith.extf %45 : vector<22x48xbf16> to vector<22x48xf32>
    %cst_30 = arith.constant dense<0.000000e+00> : vector<32x48xf32>
    %47 = tpu.matmul %41, %46, %cst_30 {dimension_numbers = #tpu.dot_dimension_numbers<[1], [0], [0], [1], [0, 0, 1, 1], [], []>} : vector<32x22xf32>, vector<22x48xf32>, vector<32x48xf32> -> vector<32x48xf32>
    %c112 = arith.constant 112 : index
    %c0_31 = arith.constant 0 : index
    %48 = vector.load %arg2[%c112, %c0_31] : memref<576x128xbf16, #tpu.memory_space<vmem>>, vector<22x48xbf16>
    %49 = arith.extf %48 : vector<22x48xbf16> to vector<22x48xf32>
    %cst_32 = arith.constant dense<0.000000e+00> : vector<32x48xf32>
    %50 = tpu.matmul %41, %49, %cst_32 {dimension_numbers = #tpu.dot_dimension_numbers<[1], [0], [0], [1], [0, 0, 1, 1], [], []>} : vector<32x22xf32>, vector<22x48xf32>, vector<32x48xf32> -> vector<32x48xf32>
    %c136 = arith.constant 136 : index
    %c0_33 = arith.constant 0 : index
    %51 = vector.load %arg2[%c136, %c0_33] : memref<576x128xbf16, #tpu.memory_space<vmem>>, vector<22x48xbf16>
    %52 = arith.extf %51 : vector<22x48xbf16> to vector<22x48xf32>
    %cst_34 = arith.constant dense<0.000000e+00> : vector<32x48xf32>
    %53 = tpu.matmul %41, %52, %cst_34 {dimension_numbers = #tpu.dot_dimension_numbers<[1], [0], [0], [1], [0, 0, 1, 1], [], []>} : vector<32x22xf32>, vector<22x48xf32>, vector<32x48xf32> -> vector<32x48xf32>
    %54 = tpu.concatenate %44, %47, %50, %53 in 0 : vector<32x48xf32>, vector<32x48xf32>, vector<32x48xf32>, vector<32x48xf32> -> vector<128x48xf32>
    %c48_35 = arith.constant 48 : index
    %c0_36 = arith.constant 0 : index
    %55 = vector.load %arg1[%c48_35, %c0_36] : memref<88x256xf32, #tpu.memory_space<vmem>>, vector<16x128xf32>
    %c48_37 = arith.constant 48 : index
    %c128_38 = arith.constant 128 : index
    %56 = vector.load %arg1[%c48_37, %c128_38] : memref<88x256xf32, #tpu.memory_space<vmem>>, vector<16x1xf32>
    %cst_39 = arith.constant dense<0.000000e+00> : vector<16x48xf32>
    %57 = tpu.matmul %55, %54, %cst_39 {dimension_numbers = #tpu.dot_dimension_numbers<[1], [0], [0], [1], [0, 0, 1, 1], [], []>} : vector<16x128xf32>, vector<128x48xf32>, vector<16x48xf32> -> vector<16x48xf32>
    %58 = vector.broadcast %56 : vector<16x1xf32> to vector<16x48xf32>
    %59 = arith.addf %57, %58 : vector<16x48xf32>
    %cst_40 = arith.constant 0.000000e+00 : f32
    %60 = vector.broadcast %cst_40 : f32 to vector<16x48xf32>
    %61 = arith.maximumf %59, %60 : vector<16x48xf32>
    %c160 = arith.constant 160 : index
    %c0_41 = arith.constant 0 : index
    %62 = vector.load %arg2[%c160, %c0_41] : memref<576x128xbf16, #tpu.memory_space<vmem>>, vector<48x54xbf16>
    %63 = arith.extf %62 : vector<48x54xbf16> to vector<48x54xf32>
    %cst_42 = arith.constant dense<0.000000e+00> : vector<16x54xf32>
    %64 = tpu.matmul %61, %63, %cst_42 {dimension_numbers = #tpu.dot_dimension_numbers<[1], [0], [0], [1], [0, 0, 1, 1], [], []>} : vector<16x48xf32>, vector<48x54xf32>, vector<16x54xf32> -> vector<16x54xf32>
    %c208 = arith.constant 208 : index
    %c0_43 = arith.constant 0 : index
    %65 = vector.load %arg2[%c208, %c0_43] : memref<576x128xbf16, #tpu.memory_space<vmem>>, vector<48x54xbf16>
    %66 = arith.extf %65 : vector<48x54xbf16> to vector<48x54xf32>
    %cst_44 = arith.constant dense<0.000000e+00> : vector<16x54xf32>
    %67 = tpu.matmul %61, %66, %cst_44 {dimension_numbers = #tpu.dot_dimension_numbers<[1], [0], [0], [1], [0, 0, 1, 1], [], []>} : vector<16x48xf32>, vector<48x54xf32>, vector<16x54xf32> -> vector<16x54xf32>
    %c256 = arith.constant 256 : index
    %c0_45 = arith.constant 0 : index
    %68 = vector.load %arg2[%c256, %c0_45] : memref<576x128xbf16, #tpu.memory_space<vmem>>, vector<48x54xbf16>
    %69 = arith.extf %68 : vector<48x54xbf16> to vector<48x54xf32>
    %cst_46 = arith.constant dense<0.000000e+00> : vector<16x54xf32>
    %70 = tpu.matmul %61, %69, %cst_46 {dimension_numbers = #tpu.dot_dimension_numbers<[1], [0], [0], [1], [0, 0, 1, 1], [], []>} : vector<16x48xf32>, vector<48x54xf32>, vector<16x54xf32> -> vector<16x54xf32>
    %c304 = arith.constant 304 : index
    %c0_47 = arith.constant 0 : index
    %71 = vector.load %arg2[%c304, %c0_47] : memref<576x128xbf16, #tpu.memory_space<vmem>>, vector<48x54xbf16>
    %72 = arith.extf %71 : vector<48x54xbf16> to vector<48x54xf32>
    %cst_48 = arith.constant dense<0.000000e+00> : vector<16x54xf32>
    %73 = tpu.matmul %61, %72, %cst_48 {dimension_numbers = #tpu.dot_dimension_numbers<[1], [0], [0], [1], [0, 0, 1, 1], [], []>} : vector<16x48xf32>, vector<48x54xf32>, vector<16x54xf32> -> vector<16x54xf32>
    %74 = tpu.concatenate %64, %67, %70, %73 in 0 : vector<16x54xf32>, vector<16x54xf32>, vector<16x54xf32>, vector<16x54xf32> -> vector<64x54xf32>
    %c64_49 = arith.constant 64 : index
    %c0_50 = arith.constant 0 : index
    %75 = vector.load %arg1[%c64_49, %c0_50] : memref<88x256xf32, #tpu.memory_space<vmem>>, vector<8x64xf32>
    %c64_51 = arith.constant 64 : index
    %c128_52 = arith.constant 128 : index
    %76 = vector.load %arg1[%c64_51, %c128_52] : memref<88x256xf32, #tpu.memory_space<vmem>>, vector<8x1xf32>
    %cst_53 = arith.constant dense<0.000000e+00> : vector<8x54xf32>
    %77 = tpu.matmul %75, %74, %cst_53 {dimension_numbers = #tpu.dot_dimension_numbers<[1], [0], [0], [1], [0, 0, 1, 1], [], []>} : vector<8x64xf32>, vector<64x54xf32>, vector<8x54xf32> -> vector<8x54xf32>
    %78 = vector.broadcast %76 : vector<8x1xf32> to vector<8x54xf32>
    %79 = arith.addf %77, %78 : vector<8x54xf32>
    %cst_54 = arith.constant 0.000000e+00 : f32
    %80 = vector.broadcast %cst_54 : f32 to vector<8x54xf32>
    %81 = arith.maximumf %79, %80 : vector<8x54xf32>
    %c352 = arith.constant 352 : index
    %c0_55 = arith.constant 0 : index
    %82 = vector.load %arg2[%c352, %c0_55] : memref<576x128xbf16, #tpu.memory_space<vmem>>, vector<54x128xbf16>
    %83 = arith.extf %82 : vector<54x128xbf16> to vector<54x128xf32>
    %cst_56 = arith.constant dense<0.000000e+00> : vector<8x128xf32>
    %84 = tpu.matmul %81, %83, %cst_56 {dimension_numbers = #tpu.dot_dimension_numbers<[1], [0], [0], [1], [0, 0, 1, 1], [], []>} : vector<8x54xf32>, vector<54x128xf32>, vector<8x128xf32> -> vector<8x128xf32>
    %c408 = arith.constant 408 : index
    %c0_57 = arith.constant 0 : index
    %85 = vector.load %arg2[%c408, %c0_57] : memref<576x128xbf16, #tpu.memory_space<vmem>>, vector<54x128xbf16>
    %86 = arith.extf %85 : vector<54x128xbf16> to vector<54x128xf32>
    %cst_58 = arith.constant dense<0.000000e+00> : vector<8x128xf32>
    %87 = tpu.matmul %81, %86, %cst_58 {dimension_numbers = #tpu.dot_dimension_numbers<[1], [0], [0], [1], [0, 0, 1, 1], [], []>} : vector<8x54xf32>, vector<54x128xf32>, vector<8x128xf32> -> vector<8x128xf32>
    %c464 = arith.constant 464 : index
    %c0_59 = arith.constant 0 : index
    %88 = vector.load %arg2[%c464, %c0_59] : memref<576x128xbf16, #tpu.memory_space<vmem>>, vector<54x128xbf16>
    %89 = arith.extf %88 : vector<54x128xbf16> to vector<54x128xf32>
    %cst_60 = arith.constant dense<0.000000e+00> : vector<8x128xf32>
    %90 = tpu.matmul %81, %89, %cst_60 {dimension_numbers = #tpu.dot_dimension_numbers<[1], [0], [0], [1], [0, 0, 1, 1], [], []>} : vector<8x54xf32>, vector<54x128xf32>, vector<8x128xf32> -> vector<8x128xf32>
    %c520 = arith.constant 520 : index
    %c0_61 = arith.constant 0 : index
    %91 = vector.load %arg2[%c520, %c0_61] : memref<576x128xbf16, #tpu.memory_space<vmem>>, vector<54x128xbf16>
    %92 = arith.extf %91 : vector<54x128xbf16> to vector<54x128xf32>
    %cst_62 = arith.constant dense<0.000000e+00> : vector<8x128xf32>
    %93 = tpu.matmul %81, %92, %cst_62 {dimension_numbers = #tpu.dot_dimension_numbers<[1], [0], [0], [1], [0, 0, 1, 1], [], []>} : vector<8x54xf32>, vector<54x128xf32>, vector<8x128xf32> -> vector<8x128xf32>
    %94 = tpu.concatenate %84, %87, %90, %93 in 0 : vector<8x128xf32>, vector<8x128xf32>, vector<8x128xf32>, vector<8x128xf32> -> vector<32x128xf32>
    %c72 = arith.constant 72 : index
    %c0_63 = arith.constant 0 : index
    %95 = vector.load %arg1[%c72, %c0_63] : memref<88x256xf32, #tpu.memory_space<vmem>>, vector<16x32xf32>
    %c72_64 = arith.constant 72 : index
    %c128_65 = arith.constant 128 : index
    %96 = vector.load %arg1[%c72_64, %c128_65] : memref<88x256xf32, #tpu.memory_space<vmem>>, vector<16x1xf32>
    %cst_66 = arith.constant dense<0.000000e+00> : vector<16x128xf32>
    %97 = tpu.matmul %95, %94, %cst_66 {dimension_numbers = #tpu.dot_dimension_numbers<[1], [0], [0], [1], [0, 0, 1, 1], [], []>} : vector<16x32xf32>, vector<32x128xf32>, vector<16x128xf32> -> vector<16x128xf32>
    %98 = vector.broadcast %96 : vector<16x1xf32> to vector<16x128xf32>
    %99 = arith.addf %97, %98 : vector<16x128xf32>
    %cst_67 = arith.constant 5.000000e-01 : f32
    %100 = vector.broadcast %cst_67 : f32 to vector<16x128xf32>
    %101 = arith.mulf %100, %99 : vector<16x128xf32>
    %102 = math.tanh %101 : vector<16x128xf32>
    %cst_68 = arith.constant 5.000000e-01 : f32
    %103 = vector.broadcast %cst_68 : f32 to vector<16x128xf32>
    %104 = arith.mulf %103, %102 : vector<16x128xf32>
    %cst_69 = arith.constant 5.000000e-01 : f32
    %105 = vector.broadcast %cst_69 : f32 to vector<16x128xf32>
    %106 = arith.addf %104, %105 : vector<16x128xf32>
    %c0_70 = arith.constant 0 : index
    %c0_71 = arith.constant 0 : index
    %107 = vector.load %arg3[%c0_70, %c0_71] : memref<16x128xf32, #tpu.memory_space<vmem>>, vector<16x128xf32>
    tpu.vector_store %arg3[%c0_70, %c0_71], %106 {strides = array<i32>} : memref<16x128xf32, #tpu.memory_space<vmem>>, vector<16x128xf32>,
    return
  }
}

</mosaic_0001>

<llo_original>
// kernel: forward.1
$region0: #{forward.1}
  #allocation0 [shape = 'u32[]', space=smem, size = 0x4, offset = 0x4, fixed_abs, tag = 'smem constant byte address 0x4 - core index']
  #allocation1 [shape = 'u32[72,128]{1,0:T(1,128)}', space=vmem, size = 0x9000, scoped, tag = 'internal scratch']
  %s0 = inlined_call_operand.vmem [shape: f32[9,16], index: 0, kind: input, shape index: {}]
  %s1 = inlined_call_operand.hbm [shape: f32[88,256], index: 1, kind: input, shape index: {}]
  %s2 = inlined_call_operand.hbm [shape: bf16[576,128], index: 2, kind: input, shape index: {}]
  %s3 = inlined_call_operand.vmem [shape: f32[16,128], index: 3, kind: output, shape index: {}]
  %s4 = sld [smem:[#allocation0]]
  $region30: #{forward.1} parent=0
    _
  %s6 = ssub.s32 1, %s4
  %s7 = scalar_select 0, %s6, %s4
  $region1: #{forward.1} parent=0
    #allocation2 [shape = 'u8[90112]{0}', space=vmem, size = 0x16000, scoped, tag = 'input window, operand 1, single buffered']
    #allocation3 [shape = 's32[1]{0}', space=sflag, size = 0x4, scoped, tag = 'scoped memory for forward.1']
    #allocation4 [shape = 'u8[147456]{0}', space=vmem, size = 0x24000, scoped, tag = 'input window, operand 2, single buffered']
    #allocation5 [shape = 's32[1]{0}', space=sflag, size = 0x4, scoped, tag = 'scoped memory for forward.1']
    %8 = vsyncpa [#allocation3], 0
    %9 = vsyncpa [#allocation5], 0
    // Predicated region
    $region2: #{forward.1} parent=1 // pred_check
      _
    $region3: #{forward.1} parent=1 // pred_check_branch
      %11 = sbr.rel (0) target = $region5
    $region4: #{forward.1} parent=1 // pred_region
      _
    $region5: #{forward.1} parent=1 // pred_fallthru
      _
    // Predicated region
    $region6: #{forward.1} parent=1 // pred_check
      _
    $region7: #{forward.1} parent=1 // pred_check_branch
      %13 = sbr.rel (0) target = $region9
    $region8: #{forward.1} parent=1 // pred_region
      %15 = vsyncadd [#allocation3], 0
      %s16 = sshll.u32 %s1, 4
      %s17 = int_to_ptr.hbm [resolvable:$true] %s16
      %s18 = sshll.u32 [#allocation2], 4
      %s19 = int_to_ptr.vmem [resolvable:$true] %s18
      %24 = dma.hbm_to_vmem [thread:$0]  %s17, 2816, %s19, [#allocation3], 256, 256, 16
    $region9: #{forward.1} parent=1 // pred_fallthru
      _
    // Predicated region
    $region10: #{forward.1} parent=1 // pred_check
      _
    $region11: #{forward.1} parent=1 // pred_check_branch
      %26 = sbr.rel (0) target = $region13
    $region12: #{forward.1} parent=1 // pred_region
      %28 = vsyncadd [#allocation5], 0
      %s29 = sshll.u32 %s2, 4
      %s30 = int_to_ptr.hbm [resolvable:$true] %s29
      %s31 = sshll.u32 [#allocation4], 4
      %s32 = int_to_ptr.vmem [resolvable:$true] %s31
      %37 = dma.hbm_to_vmem [thread:$0]  %s30, 4608, %s32, [#allocation5], 64, 64, 4
    $region13: #{forward.1} parent=1 // pred_fallthru
      _
    // Predicated region
    $region14: #{forward.1} parent=1 // pred_check
      _
    $region15: #{forward.1} parent=1 // pred_check_branch
      %39 = sbr.rel (0) target = $region17
    $region16: #{forward.1} parent=1 // pred_region
      %41 = dma.done [#allocation3], 2816
    $region17: #{forward.1} parent=1 // pred_fallthru
      _
    // Predicated region
    $region18: #{forward.1} parent=1 // pred_check
      _
    $region19: #{forward.1} parent=1 // pred_check_branch
      %43 = sbr.rel (0) target = $region21
    $region20: #{forward.1} parent=1 // pred_region
      %45 = dma.done [#allocation5], 4608
    $region21: #{forward.1} parent=1 // pred_fallthru
      _
    %v46 = vld [vmem:[%s0] sm:$0xff]
    %v47 = vld [vmem:[%s0 + $0x8] sm:$0x1]
    %v48 = vld [vmem:[#allocation2] sm:$0xff]
    %v49 = vld [vmem:[#allocation2 + $0x8] sm:$0xff]
    %51 = vset.pattern.permute.xlu0 0
    %52 = vperm.xlu0 %51, %v49
    %v53 = vpop.permute.xlu0 %52
    %vm55 = vcmask 64512
    %v57 = vsel %vm55, %v48, 0
    %59 = vmatpush.msra.mxu0 0.0
    %60 = vmatpush.msra.mxu0 0.0
    %61 = vmatpush.msra.mxu0 0.0
    %62 = vmatpush.msra.mxu0 0.0
    %63 = vmatpush.msra.mxu0 0.0
    %64 = vmatpush.msra.mxu0 0.0
    %65 = vmatpush.msra.mxu0 0.0
    %66 = vmatpush.msra.mxu0 0.0
    %67 = vmatpush.msra.mxu0 0.0
    %68 = vmatpush.msra.mxu0 0.0
    %69 = vmatpush.msra.mxu0 0.0
    %70 = vmatpush.msra.mxu0 0.0
    %71 = vmatpush.msra.mxu0 0.0
    %72 = vmatpush.msra.mxu0 0.0
    %73 = vmatpush.msra.mxu0 0.0
    %74 = vmatpush.msra.mxu0 %v46
    %75 = vmatmul.f32.gmra.mxu0 %v57
    %v76 = vpop.f32.mrf.mxu0
    %v77 = vadd.f32 %v53, %v76
    %78 = vdwg.mxu0
    %v79 = vmax.f32 %v77, 0.0
    %v80 = vld [vmem:[#allocation2 + $0x10] sm:$0xff]
    %v81 = vld [vmem:[#allocation2 + $0x18] sm:$0xff]
    %83 = vset.pattern.permute.xlu0 0
    %84 = vperm.xlu0 %83, %v81
    %v85 = vpop.permute.xlu0 %84
    %v88 = vsel %vm55, %v80, 0
    %90 = vmatpush.msra.mxu0 0.0
    %91 = vmatpush.msra.mxu0 0.0
    %92 = vmatpush.msra.mxu0 0.0
    %93 = vmatpush.msra.mxu0 0.0
    %94 = vmatpush.msra.mxu0 0.0
    %95 = vmatpush.msra.mxu0 0.0
    %96 = vmatpush.msra.mxu0 0.0
    %97 = vmatpush.msra.mxu0 0.0
    %98 = vmatpush.msra.mxu0 0.0
    %99 = vmatpush.msra.mxu0 0.0
    %100 = vmatpush.msra.mxu0 0.0
    %101 = vmatpush.msra.mxu0 0.0
    %102 = vmatpush.msra.mxu0 0.0
    %103 = vmatpush.msra.mxu0 0.0
    %104 = vmatpush.msra.mxu0 0.0
    %105 = vmatpush.msra.mxu0 %v79
    %106 = vmatmul.f32.gmra.mxu0 %v88
    %v107 = vpop.f32.mrf.mxu0
    %v108 = vadd.f32 %v85, %v107
    %109 = vdwg.mxu0
    %v110 = vperm.slane %v47, 0
    %v111 = vmul.f32 %v108, %v110
    %v113 = vrot.slane %v108, 4
    %v115 = vadd.f32 %v111, %v113
    %v116 = vand.u32 2147483647, %v115
    %vm117 = vcmp.le.f32.partialorder %v116, 0.7853982
    %vm118 = vcmp.lt.s32.totalorder %v115, 0
    %v119 = vand.u32 %v115, 2139095040
    %v120 = vshrl.u32 %v119, 23
    %v121 = vsub.s32 %v120, 127
    %v122 = vand.u32 2147483647, %v115
    %v123 = vand.u32 %v122, 8388607
    %v124 = vor.u32 %v123, 8388608
    %v125 = vsub.s32 0, %v124
    %v126 = vadd.s32 %v121, 1
    %vm127 = vcmp.gt.s32.totalorder %v126, 0
    %v128 = vsel %vm127, %v126, 0
    %v129 = vshrl.u32 %v128, 5
    %v130 = vand.u32 %v128, 31
    %v131 = vsub.s32 32, %v130
    %v132 = vshrl.u32 683565275, %v131
    %v133 = vshll.u32 683565275, %v130
    %v134 = vshrl.u32 2475754826, %v131
    %v135 = vor.u32 %v133, %v134
    %v136 = vshll.u32 2475754826, %v130
    %v137 = vshrl.u32 2131351028, %v131
    %v138 = vor.u32 %v136, %v137
    %v139 = vshll.u32 2131351028, %v130
    %v140 = vshrl.u32 2102212464, %v131
    %v141 = vor.u32 %v139, %v140
    %v142 = vshll.u32 2102212464, %v130
    %v143 = vshrl.u32 920167782, %v131
    %v144 = vor.u32 %v142, %v143
    %v145 = vshll.u32 920167782, %v130
    %v146 = vshrl.u32 1326507024, %v131
    %v147 = vor.u32 %v145, %v146
    %vm148 = vcmp.lt.s32.totalorder %v129, 1
    %vm149 = vcmp.lt.s32.totalorder %v129, 2
    %vm150 = vcmp.lt.s32.totalorder %v129, 3
    %vm151 = vcmp.lt.s32.totalorder %v129, 4
    %v152 = vsel %vm148, %v132, %v135
    %v153 = vsel %vm151, %v141, 2102212464
    %v154 = vsel %vm150, %v138, %v153
    %v155 = vsel %vm149, %v152, %v154
    %v156 = vsel %vm148, %v135, %v138
    %v157 = vsel %vm151, %v144, 920167782
    %v158 = vsel %vm150, %v141, %v157
    %v159 = vsel %vm149, %v156, %v158
    %v160 = vsel %vm148, %v138, %v141
    %v161 = vsel %vm151, %v147, 1326507024
    %v162 = vsel %vm150, %v144, %v161
    %v163 = vsel %vm149, %v160, %v162
    %v164 = vshll.u32 %v124, 8
    %v165 = vand.u32 %v164, 65535
    %v166 = vshrl.u32 %v164, 16
    %v167 = vand.u32 %v163, 65535
    %v168 = vshrl.u32 %v163, 16
    %v169 = vmul.u32 %v165, %v167
    %v170 = vmul.u32 %v165, %v168
    %v171 = vmul.u32 %v166, %v167
    %v172 = vmul.u32 %v166, %v168
    %v173 = vshll.u32 %v170, 16
    %v174 = vshrl.u32 %v170, 16
    %v175 = vshll.u32 %v171, 16
    %v176 = vshrl.u32 %v171, 16
    %vm177 = vc.u32 %v169, %v173
    %v178 = vsel %vm177, 1, 0
    %v179 = vadd.s32 %v169, %v173
    %v180 = vadd.s32 %v172, %v178
    %vm181 = vc.u32 %v179, %v175
    %v182 = vsel %vm181, 1, 0
    %v183 = vadd.s32 %v179, %v175
    %v184 = vadd.s32 %v180, %v182
    %v185 = vadd.s32 %v184, %v174
    %v186 = vadd.s32 %v185, %v176
    %v187 = vand.u32 %v164, 65535
    %v188 = vshrl.u32 %v164, 16
    %v189 = vand.u32 %v159, 65535
    %v190 = vshrl.u32 %v159, 16
    %v191 = vmul.u32 %v187, %v189
    %v192 = vmul.u32 %v187, %v190
    %v193 = vmul.u32 %v188, %v189
    %v194 = vmul.u32 %v188, %v190
    %v195 = vshll.u32 %v192, 16
    %v196 = vshrl.u32 %v192, 16
    %v197 = vshll.u32 %v193, 16
    %v198 = vshrl.u32 %v193, 16
    %vm199 = vc.u32 %v191, %v195
    %v200 = vsel %vm199, 1, 0
    %v201 = vadd.s32 %v191, %v195
    %v202 = vadd.s32 %v194, %v200
    %vm203 = vc.u32 %v201, %v197
    %v204 = vsel %vm203, 1, 0
    %v205 = vadd.s32 %v201, %v197
    %v206 = vadd.s32 %v202, %v204
    %v207 = vadd.s32 %v206, %v196
    %v208 = vadd.s32 %v207, %v198
    %v209 = vmul.u32 %v164, %v155
    %v210 = vadd.s32 %v186, %v205
    %vm211 = vc.u32 %v186, %v205
    %v212 = vadd.s32 %v208, 1
    %v213 = vsel %vm211, %v212, %v208
    %v214 = vadd.s32 %v209, %v213
    %v215 = vadd.s32 %v214, 536870912
    %v216 = vshrl.u32 %v215, 30
    %v217 = vshll.u32 %v216, 30
    %v218 = vsub.s32 %v214, %v217
    %vm219 = vcmp.lt.s32.totalorder %v218, 0
    %v220 = vsub.s32 0, %v218
    %v221 = vsel %vm219, %v220, %v218
    %v222 = vclz %v221
    %v223 = vsub.s32 %v222, 2
    %vm224 = vcmp.gt.s32.totalorder 0, %v223
    %v225 = vsel %vm224, 0, %v223
    %v226 = vsub.s32 32, %v225
    %v227 = vshll.u32 %v218, %v225
    %v228 = vshrl.u32 %v210, %v226
    %v229 = vor.u32 %v227, %v228
    %v230 = vsub.s32 4294967266, %v225
    %v231 = vadd.s32 %v230, 127
    %v232 = vshll.u32 %v231, 23
    %v233 = vor.u32 4788187, %v232
    %v234 = vand.u32 2147483647, %v233
    %v236 = vcvt.s32.f32 %v229
    %v237 = vmul.f32 %v236, %v234
    %v238 = vxor.u32 %v237, 2147483648
    %v239 = vsel %vm118, %v238, %v237
    %v240 = vsub.s32 4, %v216
    %v241 = vsel %vm118, %v240, %v216
    %v242 = vsel %vm117, %v115, %v239
    %v243 = vsel %vm117, 0, %v241
    %v244 = vmul.f32 %v242, %v242
    %v245 = vmul.f32 %v244, -0.001358992
    %v246 = vadd.f32 %v245, 0.041655596
    %v247 = vmul.f32 %v244, %v246
    %v248 = vadd.f32 %v247, -0.4999988
    %v249 = vmul.f32 %v244, %v248
    %v250 = vadd.f32 1.0, %v249
    %v251 = vmul.f32 %v242, %v242
    %v252 = vmul.f32 %v251, -0.00019511016
    %v253 = vadd.f32 %v252, 0.008332121
    %v254 = vmul.f32 %v251, %v253
    %v255 = vadd.f32 %v254, -0.16666654
    %v256 = vmul.f32 %v251, %v255
    %v257 = vadd.f32 %v256, 1.0
    %v258 = vmul.f32 %v257, %v242
    %vm259 = vweird.f32 %v115
    %v260 = vadd.s32 %v243, 3
    %v261 = vand.u32 %v260, 3
    %vm262 = vcmp.lt.s32.totalorder %v261, 2
    %vm263 = vcmp.eq.s32.totalorder %v261, 0
    %v264 = vxor.u32 %v258, 2147483648
    %v265 = vsel %vm263, %v250, %v264
    %vm266 = vcmp.eq.s32.totalorder %v261, 2
    %v267 = vxor.u32 %v250, 2147483648
    %v268 = vsel %vm266, %v267, %v258
    %v269 = vsel %vm262, %v265, %v268
    %v270 = vsel %vm259, nan, %v269
    %vm271 = vcmask 1043456
    %v272 = vsel %vm271, %v270, 0.0
    %v273 = vld [vmem:[#allocation4] sm:$0xf]
    %v274 = vld [vmem:[#allocation4 + $0x4] sm:$0xf]
    %v275 = vunpack.c.l.bf16 %v273
    %v276 = vunpack.c.l.bf16 %v274
    %vm277 = vcmask 130048
    %v279 = vsel %vm277, %v46, 0
    %v282 = vsel %vm277, %v272, 0
    %284 = vmatpush.msra.mxu0 0.0
    %285 = vmatpush.msra.mxu0 0.0
    %286 = vmatpush.msra.mxu0 0.0
    %287 = vmatpush.msra.mxu0 0.0
    %288 = vmatpush.msra.mxu0 0.0
    %289 = vmatpush.msra.mxu0 0.0
    %290 = vmatpush.msra.mxu0 0.0
    %291 = vmatpush.msra.mxu0 0.0
    %292 = vmatpush.msra.mxu0 0.0
    %293 = vmatpush.msra.mxu0 0.0
    %294 = vmatpush.msra.mxu0 0.0
    %295 = vmatpush.msra.mxu0 0.0
    %296 = vmatpush.msra.mxu0 0.0
    %297 = vmatpush.msra.mxu0 0.0
    %298 = vmatpush.msra.mxu0 %v276
    %299 = vmatpush.msra.mxu0 %v275
    %300 = vmatmul.f32.gmra.mxu0 %v279
    %v301 = vpop.f32.mrf.mxu0
    %v302 = vadd.f32 0.0, %v301
    %303 = vmatmul.f32.gmra.mxu0 %v282
    %v304 = vpop.f32.mrf.mxu0
    %v305 = vadd.f32 0.0, %v304
    %306 = vdwg.mxu0
    %v307 = vld [vmem:[#allocation4 + $0x8] sm:$0xf]
    %v308 = vld [vmem:[#allocation4 + $0xc] sm:$0xf]
    %v309 = vunpack.c.l.bf16 %v307
    %v310 = vunpack.c.l.bf16 %v308
    %311 = vmatpush.msra.mxu0 0.0
    %312 = vmatpush.msra.mxu0 0.0
    %313 = vmatpush.msra.mxu0 0.0
    %314 = vmatpush.msra.mxu0 0.0
    %315 = vmatpush.msra.mxu0 0.0
    %316 = vmatpush.msra.mxu0 0.0
    %317 = vmatpush.msra.mxu0 0.0
    %318 = vmatpush.msra.mxu0 0.0
    %319 = vmatpush.msra.mxu0 0.0
    %320 = vmatpush.msra.mxu0 0.0
    %321 = vmatpush.msra.mxu0 0.0
    %322 = vmatpush.msra.mxu0 0.0
    %323 = vmatpush.msra.mxu0 0.0
    %324 = vmatpush.msra.mxu0 0.0
    %325 = vmatpush.msra.mxu0 %v310
    %326 = vmatpush.msra.mxu0 %v309
    %327 = vmatmul.f32.gmra.mxu0 %v279
    %v328 = vpop.f32.mrf.mxu0
    %v329 = vadd.f32 0.0, %v328
    %330 = vmatmul.f32.gmra.mxu0 %v282
    %v331 = vpop.f32.mrf.mxu0
    %v332 = vadd.f32 0.0, %v331
    %333 = vdwg.mxu0
    %v334 = vld [vmem:[#allocation4 + $0x10] sm:$0xf]
    %v335 = vld [vmem:[#allocation4 + $0x14] sm:$0xf]
    %v336 = vunpack.c.l.bf16 %v334
    %v337 = vunpack.c.l.bf16 %v335
    %338 = vmatpush.msra.mxu0 0.0
    %339 = vmatpush.msra.mxu0 0.0
    %340 = vmatpush.msra.mxu0 0.0
    %341 = vmatpush.msra.mxu0 0.0
    %342 = vmatpush.msra.mxu0 0.0
    %343 = vmatpush.msra.mxu0 0.0
    %344 = vmatpush.msra.mxu0 0.0
    %345 = vmatpush.msra.mxu0 0.0
    %346 = vmatpush.msra.mxu0 0.0
    %347 = vmatpush.msra.mxu0 0.0
    %348 = vmatpush.msra.mxu0 0.0
    %349 = vmatpush.msra.mxu0 0.0
    %350 = vmatpush.msra.mxu0 0.0
    %351 = vmatpush.msra.mxu0 0.0
    %352 = vmatpush.msra.mxu0 %v337
    %353 = vmatpush.msra.mxu0 %v336
    %354 = vmatmul.f32.gmra.mxu0 %v279
    %v355 = vpop.f32.mrf.mxu0
    %v356 = vadd.f32 0.0, %v355
    %357 = vmatmul.f32.gmra.mxu0 %v282
    %v358 = vpop.f32.mrf.mxu0
    %v359 = vadd.f32 0.0, %v358
    %360 = vdwg.mxu0
    %v361 = vld [vmem:[#allocation4 + $0x18] sm:$0xf]
    %v362 = vld [vmem:[#allocation4 + $0x1c] sm:$0xf]
    %v363 = vunpack.c.l.bf16 %v361
    %v364 = vunpack.c.l.bf16 %v362
    %365 = vmatpush.msra.mxu0 0.0
    %366 = vmatpush.msra.mxu0 0.0
    %367 = vmatpush.msra.mxu0 0.0
    %368 = vmatpush.msra.mxu0 0.0
    %369 = vmatpush.msra.mxu0 0.0
    %370 = vmatpush.msra.mxu0 0.0
    %371 = vmatpush.msra.mxu0 0.0
    %372 = vmatpush.msra.mxu0 0.0
    %373 = vmatpush.msra.mxu0 0.0
    %374 = vmatpush.msra.mxu0 0.0
    %375 = vmatpush.msra.mxu0 0.0
    %376 = vmatpush.msra.mxu0 0.0
    %377 = vmatpush.msra.mxu0 0.0
    %378 = vmatpush.msra.mxu0 0.0
    %379 = vmatpush.msra.mxu0 %v364
    %380 = vmatpush.msra.mxu0 %v363
    %381 = vmatmul.f32.gmra.mxu0 %v279
    %v382 = vpop.f32.mrf.mxu0
    %v383 = vadd.f32 0.0, %v382
    %384 = vmatmul.f32.gmra.mxu0 %v282
    %v385 = vpop.f32.mrf.mxu0
    %v386 = vadd.f32 0.0, %v385
    %387 = vdwg.mxu0
    %v388 = vld [vmem:[#allocation2 + $0x20] sm:$0xff]
    %v389 = vld [vmem:[#allocation2 + $0x30] sm:$0xff]
    %v390 = vld [vmem:[#allocation2 + $0x40] sm:$0xff]
    %v391 = vld [vmem:[#allocation2 + $0x50] sm:$0xff]
    %v392 = vld [vmem:[#allocation2 + $0x28] sm:$0xff]
    %v393 = vld [vmem:[#allocation2 + $0x38] sm:$0xff]
    %v394 = vld [vmem:[#allocation2 + $0x48] sm:$0xff]
    %v395 = vld [vmem:[#allocation2 + $0x58] sm:$0xff]
    %397 = vset.pattern.permute.xlu0 0
    %398 = vperm.xlu0 %397, %v392
    %v399 = vpop.permute.xlu0 %398
    %402 = vset.pattern.permute.xlu0 0
    %403 = vperm.xlu0 %402, %v393
    %v404 = vpop.permute.xlu0 %403
    %407 = vset.pattern.permute.xlu0 0
    %408 = vperm.xlu0 %407, %v394
    %v409 = vpop.permute.xlu0 %408
    %412 = vset.pattern.permute.xlu0 0
    %413 = vperm.xlu0 %412, %v395
    %v414 = vpop.permute.xlu0 %413
    %vm416 = vcmask 523264
    %v418 = vsel %vm416, %v388, 0
    %v421 = vsel %vm416, %v389, 0
    %v424 = vsel %vm416, %v390, 0
    %v427 = vsel %vm416, %v391, 0
    %429 = vmatpush.msra.mxu0 0.0
    %430 = vmatpush.msra.mxu0 0.0
    %431 = vmatpush.msra.mxu0 0.0
    %432 = vmatpush.msra.mxu0 0.0
    %433 = vmatpush.msra.mxu0 0.0
    %434 = vmatpush.msra.mxu0 0.0
    %435 = vmatpush.msra.mxu0 0.0
    %436 = vmatpush.msra.mxu0 0.0
    %437 = vmatpush.msra.mxu0 %v386
    %438 = vmatpush.msra.mxu0 %v383
    %439 = vmatpush.msra.mxu0 %v359
    %440 = vmatpush.msra.mxu0 %v356
    %441 = vmatpush.msra.mxu0 %v332
    %442 = vmatpush.msra.mxu0 %v329
    %443 = vmatpush.msra.mxu0 %v305
    %444 = vmatpush.msra.mxu0 %v302
    %445 = vmatmul.f32.gmra.mxu0 %v418
    %v446 = vpop.f32.mrf.mxu0
    %v447 = vadd.f32 %v399, %v446
    %448 = vmatmul.f32.gmra.mxu0 %v421
    %v449 = vpop.f32.mrf.mxu0
    %v450 = vadd.f32 %v404, %v449
    %451 = vmatmul.f32.gmra.mxu0 %v424
    %v452 = vpop.f32.mrf.mxu0
    %v453 = vadd.f32 %v409, %v452
    %454 = vmatmul.f32.gmra.mxu0 %v427
    %v455 = vpop.f32.mrf.mxu0
    %v456 = vadd.f32 %v414, %v455
    %457 = vdwg.mxu0
    %v458 = vmax.f32 %v447, 0.0
    %v459 = vmax.f32 %v450, 0.0
    %v460 = vmax.f32 %v453, 0.0
    %v461 = vmax.f32 %v456, 0.0
    %v462 = vld [vmem:[#allocation4 + $0x20] sm:$0xf]
    %v463 = vld [vmem:[#allocation4 + $0x24] sm:$0xf]
    %v464 = vld [vmem:[#allocation4 + $0x28] sm:$0x7]
    %v465 = vunpack.c.l.bf16 %v462
    %v466 = vunpack.c.l.bf16 %v463
    %v467 = vunpack.c.l.bf16 %v464
    %vm468 = vcmask 179200
    %v470 = vsel %vm468, %v458, 0
    %v473 = vsel %vm468, %v459, 0
    %v476 = vsel %vm468, %v460, 0
    %v479 = vsel %vm468, %v461, 0
    %vm481 = vcmask 1045504
    %v483 = vsel %vm481, %v467, 0
    %485 = vmatpush.msra.mxu0 0.0
    %486 = vmatpush.msra.mxu0 0.0
    %487 = vmatpush.msra.mxu0 0.0
    %488 = vmatpush.msra.mxu0 0.0
    %489 = vmatpush.msra.mxu0 0.0
    %490 = vmatpush.msra.mxu0 0.0
    %491 = vmatpush.msra.mxu0 0.0
    %492 = vmatpush.msra.mxu0 0.0
    %493 = vmatpush.msra.mxu0 0.0
    %494 = vmatpush.msra.mxu0 0.0
    %495 = vmatpush.msra.mxu0 0.0
    %496 = vmatpush.msra.mxu0 0.0
    %497 = vmatpush.msra.mxu0 0.0
    %498 = vmatpush.msra.mxu0 %v483
    %499 = vmatpush.msra.mxu0 %v466
    %500 = vmatpush.msra.mxu0 %v465
    %501 = vmatmul.f32.gmra.mxu0 %v470
    %v502 = vpop.f32.mrf.mxu0
    %v503 = vadd.f32 0.0, %v502
    %504 = vmatmul.f32.gmra.mxu0 %v473
    %v505 = vpop.f32.mrf.mxu0
    %v506 = vadd.f32 0.0, %v505
    %507 = vmatmul.f32.gmra.mxu0 %v476
    %v508 = vpop.f32.mrf.mxu0
    %v509 = vadd.f32 0.0, %v508
    %510 = vmatmul.f32.gmra.mxu0 %v479
    %v511 = vpop.f32.mrf.mxu0
    %v512 = vadd.f32 0.0, %v511
    %513 = vdwg.mxu0
    %v514 = vld [vmem:[#allocation4 + $0x2c] sm:$0xf]
    %v515 = vld [vmem:[#allocation4 + $0x30] sm:$0xf]
    %v516 = vld [vmem:[#allocation4 + $0x34] sm:$0x7]
    %v517 = vunpack.c.l.bf16 %v514
    %v518 = vunpack.c.l.bf16 %v515
    %v519 = vunpack.c.l.bf16 %v516
    %v521 = vsel %vm481, %v519, 0
    %523 = vmatpush.msra.mxu0 0.0
    %524 = vmatpush.msra.mxu0 0.0
    %525 = vmatpush.msra.mxu0 0.0
    %526 = vmatpush.msra.mxu0 0.0
    %527 = vmatpush.msra.mxu0 0.0
    %528 = vmatpush.msra.mxu0 0.0
    %529 = vmatpush.msra.mxu0 0.0
    %530 = vmatpush.msra.mxu0 0.0
    %531 = vmatpush.msra.mxu0 0.0
    %532 = vmatpush.msra.mxu0 0.0
    %533 = vmatpush.msra.mxu0 0.0
    %534 = vmatpush.msra.mxu0 0.0
    %535 = vmatpush.msra.mxu0 0.0
    %536 = vmatpush.msra.mxu0 %v521
    %537 = vmatpush.msra.mxu0 %v518
    %538 = vmatpush.msra.mxu0 %v517
    %539 = vmatmul.f32.gmra.mxu0 %v470
    %v540 = vpop.f32.mrf.mxu0
    %v541 = vadd.f32 0.0, %v540
    %542 = vmatmul.f32.gmra.mxu0 %v473
    %v543 = vpop.f32.mrf.mxu0
    %v544 = vadd.f32 0.0, %v543
    %545 = vmatmul.f32.gmra.mxu0 %v476
    %v546 = vpop.f32.mrf.mxu0
    %v547 = vadd.f32 0.0, %v546
    %548 = vmatmul.f32.gmra.mxu0 %v479
    %v549 = vpop.f32.mrf.mxu0
    %v550 = vadd.f32 0.0, %v549
    %551 = vdwg.mxu0
    %v552 = vld [vmem:[#allocation4 + $0x38] sm:$0xf]
    %v553 = vld [vmem:[#allocation4 + $0x3c] sm:$0xf]
    %v554 = vld [vmem:[#allocation4 + $0x40] sm:$0x7]
    %v555 = vunpack.c.l.bf16 %v552
    %v556 = vunpack.c.l.bf16 %v553
    %v557 = vunpack.c.l.bf16 %v554
    %v559 = vsel %vm481, %v557, 0
    %561 = vmatpush.msra.mxu0 0.0
    %562 = vmatpush.msra.mxu0 0.0
    %563 = vmatpush.msra.mxu0 0.0
    %564 = vmatpush.msra.mxu0 0.0
    %565 = vmatpush.msra.mxu0 0.0
    %566 = vmatpush.msra.mxu0 0.0
    %567 = vmatpush.msra.mxu0 0.0
    %568 = vmatpush.msra.mxu0 0.0
    %569 = vmatpush.msra.mxu0 0.0
    %570 = vmatpush.msra.mxu0 0.0
    %571 = vmatpush.msra.mxu0 0.0
    %572 = vmatpush.msra.mxu0 0.0
    %573 = vmatpush.msra.mxu0 0.0
    %574 = vmatpush.msra.mxu0 %v559
    %575 = vmatpush.msra.mxu0 %v556
    %576 = vmatpush.msra.mxu0 %v555
    %577 = vmatmul.f32.gmra.mxu0 %v470
    %v578 = vpop.f32.mrf.mxu0
    %v579 = vadd.f32 0.0, %v578
    %580 = vmatmul.f32.gmra.mxu0 %v473
    %v581 = vpop.f32.mrf.mxu0
    %v582 = vadd.f32 0.0, %v581
    %583 = vmatmul.f32.gmra.mxu0 %v476
    %v584 = vpop.f32.mrf.mxu0
    %v585 = vadd.f32 0.0, %v584
    %586 = vmatmul.f32.gmra.mxu0 %v479
    %v587 = vpop.f32.mrf.mxu0
    %v588 = vadd.f32 0.0, %v587
    %589 = vdwg.mxu0
    %v590 = vld [vmem:[#allocation4 + $0x44] sm:$0xf]
    %v591 = vld [vmem:[#allocation4 + $0x48] sm:$0xf]
    %v592 = vld [vmem:[#allocation4 + $0x4c] sm:$0x7]
    %v593 = vunpack.c.l.bf16 %v590
    %v594 = vunpack.c.l.bf16 %v591
    %v595 = vunpack.c.l.bf16 %v592
    %v597 = vsel %vm481, %v595, 0
    %599 = vmatpush.msra.mxu0 0.0
    %600 = vmatpush.msra.mxu0 0.0
    %601 = vmatpush.msra.mxu0 0.0
    %602 = vmatpush.msra.mxu0 0.0
    %603 = vmatpush.msra.mxu0 0.0
    %604 = vmatpush.msra.mxu0 0.0
    %605 = vmatpush.msra.mxu0 0.0
    %606 = vmatpush.msra.mxu0 0.0
    %607 = vmatpush.msra.mxu0 0.0
    %608 = vmatpush.msra.mxu0 0.0
    %609 = vmatpush.msra.mxu0 0.0
    %610 = vmatpush.msra.mxu0 0.0
    %611 = vmatpush.msra.mxu0 0.0
    %612 = vmatpush.msra.mxu0 %v597
    %613 = vmatpush.msra.mxu0 %v594
    %614 = vmatpush.msra.mxu0 %v593
    %615 = vmatmul.f32.gmra.mxu0 %v470
    %v616 = vpop.f32.mrf.mxu0
    %v617 = vadd.f32 0.0, %v616
    %618 = vmatmul.f32.gmra.mxu0 %v473
    %v619 = vpop.f32.mrf.mxu0
    %v620 = vadd.f32 0.0, %v619
    %621 = vmatmul.f32.gmra.mxu0 %v476
    %v622 = vpop.f32.mrf.mxu0
    %v623 = vadd.f32 0.0, %v622
    %624 = vmatmul.f32.gmra.mxu0 %v479
    %v625 = vpop.f32.mrf.mxu0
    %v626 = vadd.f32 0.0, %v625
    %627 = vdwg.mxu0
    %v628 = vld [vmem:[#allocation2 + $0x60] sm:$0xff]
    %v629 = vld [vmem:[#allocation2 + $0x70] sm:$0xff]
    %v630 = vld [vmem:[#allocation2 + $0x68] sm:$0xff]
    %v631 = vld [vmem:[#allocation2 + $0x78] sm:$0xff]
    %633 = vset.pattern.permute.xlu0 0
    %634 = vperm.xlu0 %633, %v630
    %v635 = vpop.permute.xlu0 %634
    %638 = vset.pattern.permute.xlu0 0
    %639 = vperm.xlu0 %638, %v631
    %v640 = vpop.permute.xlu0 %639
    %642 = vmatpush.msra.mxu0 %v626
    %643 = vmatpush.msra.mxu0 %v623
    %644 = vmatpush.msra.mxu0 %v620
    %645 = vmatpush.msra.mxu0 %v617
    %646 = vmatpush.msra.mxu0 %v588
    %647 = vmatpush.msra.mxu0 %v585
    %648 = vmatpush.msra.mxu0 %v582
    %649 = vmatpush.msra.mxu0 %v579
    %650 = vmatpush.msra.mxu0 %v550
    %651 = vmatpush.msra.mxu0 %v547
    %652 = vmatpush.msra.mxu0 %v544
    %653 = vmatpush.msra.mxu0 %v541
    %654 = vmatpush.msra.mxu0 %v512
    %655 = vmatpush.msra.mxu0 %v509
    %656 = vmatpush.msra.mxu0 %v506
    %657 = vmatpush.msra.mxu0 %v503
    %658 = vmatmul.f32.gmra.mxu0 %v628
    %v659 = vpop.f32.mrf.mxu0
    %v660 = vadd.f32 %v635, %v659
    %661 = vmatmul.f32.gmra.mxu0 %v629
    %v662 = vpop.f32.mrf.mxu0
    %v663 = vadd.f32 %v640, %v662
    %664 = vdwg.mxu0
    %v665 = vmax.f32 %v660, 0.0
    %v666 = vmax.f32 %v663, 0.0
    %v667 = vld [vmem:[#allocation4 + $0x50] sm:$0xf]
    %v668 = vld [vmem:[#allocation4 + $0x54] sm:$0xf]
    %v669 = vld [vmem:[#allocation4 + $0x58] sm:$0xf]
    %v670 = vld [vmem:[#allocation4 + $0x5c] sm:$0xf]
    %v671 = vld [vmem:[#allocation4 + $0x60] sm:$0xf]
    %v672 = vld [vmem:[#allocation4 + $0x64] sm:$0xf]
    %v673 = vunpack.c.l.bf16 %v667
    %v674 = vunpack.c.l.bf16 %v668
    %v675 = vunpack.c.l.bf16 %v669
    %v676 = vunpack.c.l.bf16 %v670
    %v677 = vunpack.c.l.bf16 %v671
    %v678 = vunpack.c.l.bf16 %v672
    %vm679 = vcmask 392192
    %v681 = vsel %vm679, %v665, 0
    %v684 = vsel %vm679, %v666, 0
    %686 = vmatpush.msra.mxu0 0.0
    %687 = vmatpush.msra.mxu0 0.0
    %688 = vmatpush.msra.mxu0 0.0
    %689 = vmatpush.msra.mxu0 0.0
    %690 = vmatpush.msra.mxu0 0.0
    %691 = vmatpush.msra.mxu0 0.0
    %692 = vmatpush.msra.mxu0 0.0
    %693 = vmatpush.msra.mxu0 0.0
    %694 = vmatpush.msra.mxu0 0.0
    %695 = vmatpush.msra.mxu0 0.0
    %696 = vmatpush.msra.mxu0 %v678
    %697 = vmatpush.msra.mxu0 %v677
    %698 = vmatpush.msra.mxu0 %v676
    %699 = vmatpush.msra.mxu0 %v675
    %700 = vmatpush.msra.mxu0 %v674
    %701 = vmatpush.msra.mxu0 %v673
    %702 = vmatmul.f32.gmra.mxu0 %v681
    %v703 = vpop.f32.mrf.mxu0
    %v704 = vadd.f32 0.0, %v703
    %705 = vmatmul.f32.gmra.mxu0 %v684
    %v706 = vpop.f32.mrf.mxu0
    %v707 = vadd.f32 0.0, %v706
    %708 = vdwg.mxu0
    %v709 = vld [vmem:[#allocation4 + $0x68] sm:$0xf]
    %v710 = vld [vmem:[#allocation4 + $0x6c] sm:$0xf]
    %v711 = vld [vmem:[#allocation4 + $0x70] sm:$0xf]
    %v712 = vld [vmem:[#allocation4 + $0x74] sm:$0xf]
    %v713 = vld [vmem:[#allocation4 + $0x78] sm:$0xf]
    %v714 = vld [vmem:[#allocation4 + $0x7c] sm:$0xf]
    %v715 = vunpack.c.l.bf16 %v709
    %v716 = vunpack.c.l.bf16 %v710
    %v717 = vunpack.c.l.bf16 %v711
    %v718 = vunpack.c.l.bf16 %v712
    %v719 = vunpack.c.l.bf16 %v713
    %v720 = vunpack.c.l.bf16 %v714
    %721 = vmatpush.msra.mxu0 0.0
    %722 = vmatpush.msra.mxu0 0.0
    %723 = vmatpush.msra.mxu0 0.0
    %724 = vmatpush.msra.mxu0 0.0
    %725 = vmatpush.msra.mxu0 0.0
    %726 = vmatpush.msra.mxu0 0.0
    %727 = vmatpush.msra.mxu0 0.0
    %728 = vmatpush.msra.mxu0 0.0
    %729 = vmatpush.msra.mxu0 0.0
    %730 = vmatpush.msra.mxu0 0.0
    %731 = vmatpush.msra.mxu0 %v720
    %732 = vmatpush.msra.mxu0 %v719
    %733 = vmatpush.msra.mxu0 %v718
    %734 = vmatpush.msra.mxu0 %v717
    %735 = vmatpush.msra.mxu0 %v716
    %736 = vmatpush.msra.mxu0 %v715
    %737 = vmatmul.f32.gmra.mxu0 %v681
    %v738 = vpop.f32.mrf.mxu0
    %v739 = vadd.f32 0.0, %v738
    %740 = vmatmul.f32.gmra.mxu0 %v684
    %v741 = vpop.f32.mrf.mxu0
    %v742 = vadd.f32 0.0, %v741
    %743 = vdwg.mxu0
    %v744 = vld [vmem:[#allocation4 + $0x80] sm:$0xf]
    %v745 = vld [vmem:[#allocation4 + $0x84] sm:$0xf]
    %v746 = vld [vmem:[#allocation4 + $0x88] sm:$0xf]
    %v747 = vld [vmem:[#allocation4 + $0x8c] sm:$0xf]
    %v748 = vld [vmem:[#allocation4 + $0x90] sm:$0xf]
    %v749 = vld [vmem:[#allocation4 + $0x94] sm:$0xf]
    %v750 = vunpack.c.l.bf16 %v744
    %v751 = vunpack.c.l.bf16 %v745
    %v752 = vunpack.c.l.bf16 %v746
    %v753 = vunpack.c.l.bf16 %v747
    %v754 = vunpack.c.l.bf16 %v748
    %v755 = vunpack.c.l.bf16 %v749
    %756 = vmatpush.msra.mxu0 0.0
    %757 = vmatpush.msra.mxu0 0.0
    %758 = vmatpush.msra.mxu0 0.0
    %759 = vmatpush.msra.mxu0 0.0
    %760 = vmatpush.msra.mxu0 0.0
    %761 = vmatpush.msra.mxu0 0.0
    %762 = vmatpush.msra.mxu0 0.0
    %763 = vmatpush.msra.mxu0 0.0
    %764 = vmatpush.msra.mxu0 0.0
    %765 = vmatpush.msra.mxu0 0.0
    %766 = vmatpush.msra.mxu0 %v755
    %767 = vmatpush.msra.mxu0 %v754
    %768 = vmatpush.msra.mxu0 %v753
    %769 = vmatpush.msra.mxu0 %v752
    %770 = vmatpush.msra.mxu0 %v751
    %771 = vmatpush.msra.mxu0 %v750
    %772 = vmatmul.f32.gmra.mxu0 %v681
    %v773 = vpop.f32.mrf.mxu0
    %v774 = vadd.f32 0.0, %v773
    %775 = vmatmul.f32.gmra.mxu0 %v684
    %v776 = vpop.f32.mrf.mxu0
    %v777 = vadd.f32 0.0, %v776
    %778 = vdwg.mxu0
    %v779 = vld [vmem:[#allocation4 + $0x98] sm:$0xf]
    %v780 = vld [vmem:[#allocation4 + $0x9c] sm:$0xf]
    %v781 = vld [vmem:[#allocation4 + $0xa0] sm:$0xf]
    %v782 = vld [vmem:[#allocation4 + $0xa4] sm:$0xf]
    %v783 = vld [vmem:[#allocation4 + $0xa8] sm:$0xf]
    %v784 = vld [vmem:[#allocation4 + $0xac] sm:$0xf]
    %v785 = vunpack.c.l.bf16 %v779
    %v786 = vunpack.c.l.bf16 %v780
    %v787 = vunpack.c.l.bf16 %v781
    %v788 = vunpack.c.l.bf16 %v782
    %v789 = vunpack.c.l.bf16 %v783
    %v790 = vunpack.c.l.bf16 %v784
    %791 = vmatpush.msra.mxu0 0.0
    %792 = vmatpush.msra.mxu0 0.0
    %793 = vmatpush.msra.mxu0 0.0
    %794 = vmatpush.msra.mxu0 0.0
    %795 = vmatpush.msra.mxu0 0.0
    %796 = vmatpush.msra.mxu0 0.0
    %797 = vmatpush.msra.mxu0 0.0
    %798 = vmatpush.msra.mxu0 0.0
    %799 = vmatpush.msra.mxu0 0.0
    %800 = vmatpush.msra.mxu0 0.0
    %801 = vmatpush.msra.mxu0 %v790
    %802 = vmatpush.msra.mxu0 %v789
    %803 = vmatpush.msra.mxu0 %v788
    %804 = vmatpush.msra.mxu0 %v787
    %805 = vmatpush.msra.mxu0 %v786
    %806 = vmatpush.msra.mxu0 %v785
    %807 = vmatmul.f32.gmra.mxu0 %v681
    %v808 = vpop.f32.mrf.mxu0
    %v809 = vadd.f32 0.0, %v808
    %810 = vmatmul.f32.gmra.mxu0 %v684
    %v811 = vpop.f32.mrf.mxu0
    %v812 = vadd.f32 0.0, %v811
    %813 = vdwg.mxu0
    %v814 = vld [vmem:[#allocation2 + $0x80] sm:$0xff]
    %v815 = vld [vmem:[#allocation2 + $0x88] sm:$0xff]
    %817 = vset.pattern.permute.xlu0 0
    %818 = vperm.xlu0 %817, %v815
    %v819 = vpop.permute.xlu0 %818
    %v822 = vsel %vm416, %v814, 0
    %824 = vmatpush.msra.mxu0 0.0
    %825 = vmatpush.msra.mxu0 0.0
    %826 = vmatpush.msra.mxu0 0.0
    %827 = vmatpush.msra.mxu0 0.0
    %828 = vmatpush.msra.mxu0 0.0
    %829 = vmatpush.msra.mxu0 0.0
    %830 = vmatpush.msra.mxu0 0.0
    %831 = vmatpush.msra.mxu0 0.0
    %832 = vmatpush.msra.mxu0 %v812
    %833 = vmatpush.msra.mxu0 %v809
    %834 = vmatpush.msra.mxu0 %v777
    %835 = vmatpush.msra.mxu0 %v774
    %836 = vmatpush.msra.mxu0 %v742
    %837 = vmatpush.msra.mxu0 %v739
    %838 = vmatpush.msra.mxu0 %v707
    %839 = vmatpush.msra.mxu0 %v704
    %840 = vmatmul.f32.gmra.mxu0 %v822
    %v841 = vpop.f32.mrf.mxu0
    %v842 = vadd.f32 %v819, %v841
    %843 = vdwg.mxu0
    %v844 = vmax.f32 %v842, 0.0
    %v845 = vld [vmem:[#allocation4 + $0xb0] sm:$0xf]
    %v846 = vld [vmem:[#allocation4 + $0xb4] sm:$0xf]
    %v847 = vld [vmem:[#allocation4 + $0xb8] sm:$0xf]
    %v848 = vld [vmem:[#allocation4 + $0xbc] sm:$0xf]
    %v849 = vld [vmem:[#allocation4 + $0xc0] sm:$0xf]
    %v850 = vld [vmem:[#allocation4 + $0xc4] sm:$0xf]
    %v851 = vld [vmem:[#allocation4 + $0xc8] sm:$0x7]
    %v852 = vunpack.c.l.bf16 %v845
    %v853 = vunpack.c.l.bf16 %v846
    %v854 = vunpack.c.l.bf16 %v847
    %v855 = vunpack.c.l.bf16 %v848
    %v856 = vunpack.c.l.bf16 %v849
    %v857 = vunpack.c.l.bf16 %v850
    %v858 = vunpack.c.l.bf16 %v851
    %vm859 = vcmask 441344
    %v861 = vsel %vm859, %v844, 0
    %v864 = vsel %vm481, %v858, 0
    %866 = vmatpush.msra.mxu0 0.0
    %867 = vmatpush.msra.mxu0 0.0
    %868 = vmatpush.msra.mxu0 0.0
    %869 = vmatpush.msra.mxu0 0.0
    %870 = vmatpush.msra.mxu0 0.0
    %871 = vmatpush.msra.mxu0 0.0
    %872 = vmatpush.msra.mxu0 0.0
    %873 = vmatpush.msra.mxu0 0.0
    %874 = vmatpush.msra.mxu0 0.0
    %875 = vmatpush.msra.mxu0 %v864
    %876 = vmatpush.msra.mxu0 %v857
    %877 = vmatpush.msra.mxu0 %v856
    %878 = vmatpush.msra.mxu0 %v855
    %879 = vmatpush.msra.mxu0 %v854
    %880 = vmatpush.msra.mxu0 %v853
    %881 = vmatpush.msra.mxu0 %v852
    %882 = vmatmul.f32.gmra.mxu0 %v861
    %v883 = vpop.f32.mrf.mxu0
    %v884 = vadd.f32 0.0, %v883
    %885 = vdwg.mxu0
    %v886 = vld [vmem:[#allocation4 + $0xcc] sm:$0xf]
    %v887 = vld [vmem:[#allocation4 + $0xd0] sm:$0xf]
    %v888 = vld [vmem:[#allocation4 + $0xd4] sm:$0xf]
    %v889 = vld [vmem:[#allocation4 + $0xd8] sm:$0xf]
    %v890 = vld [vmem:[#allocation4 + $0xdc] sm:$0xf]
    %v891 = vld [vmem:[#allocation4 + $0xe0] sm:$0xf]
    %v892 = vld [vmem:[#allocation4 + $0xe4] sm:$0x7]
    %v893 = vunpack.c.l.bf16 %v886
    %v894 = vunpack.c.l.bf16 %v887
    %v895 = vunpack.c.l.bf16 %v888
    %v896 = vunpack.c.l.bf16 %v889
    %v897 = vunpack.c.l.bf16 %v890
    %v898 = vunpack.c.l.bf16 %v891
    %v899 = vunpack.c.l.bf16 %v892
    %v901 = vsel %vm481, %v899, 0
    %903 = vmatpush.msra.mxu0 0.0
    %904 = vmatpush.msra.mxu0 0.0
    %905 = vmatpush.msra.mxu0 0.0
    %906 = vmatpush.msra.mxu0 0.0
    %907 = vmatpush.msra.mxu0 0.0
    %908 = vmatpush.msra.mxu0 0.0
    %909 = vmatpush.msra.mxu0 0.0
    %910 = vmatpush.msra.mxu0 0.0
    %911 = vmatpush.msra.mxu0 0.0
    %912 = vmatpush.msra.mxu0 %v901
    %913 = vmatpush.msra.mxu0 %v898
    %914 = vmatpush.msra.mxu0 %v897
    %915 = vmatpush.msra.mxu0 %v896
    %916 = vmatpush.msra.mxu0 %v895
    %917 = vmatpush.msra.mxu0 %v894
    %918 = vmatpush.msra.mxu0 %v893
    %919 = vmatmul.f32.gmra.mxu0 %v861
    %v920 = vpop.f32.mrf.mxu0
    %v921 = vadd.f32 0.0, %v920
    %922 = vdwg.mxu0
    %v923 = vld [vmem:[#allocation4 + $0xe8] sm:$0xf]
    %v924 = vld [vmem:[#allocation4 + $0xec] sm:$0xf]
    %v925 = vld [vmem:[#allocation4 + $0xf0] sm:$0xf]
    %v926 = vld [vmem:[#allocation4 + $0xf4] sm:$0xf]
    %v927 = vld [vmem:[#allocation4 + $0xf8] sm:$0xf]
    %v928 = vld [vmem:[#allocation4 + $0xfc] sm:$0xf]
    %v929 = vld [vmem:[#allocation4 + $0x100] sm:$0x7]
    %v930 = vunpack.c.l.bf16 %v923
    %v931 = vunpack.c.l.bf16 %v924
    %v932 = vunpack.c.l.bf16 %v925
    %v933 = vunpack.c.l.bf16 %v926
    %v934 = vunpack.c.l.bf16 %v927
    %v935 = vunpack.c.l.bf16 %v928
    %v936 = vunpack.c.l.bf16 %v929
    %v938 = vsel %vm481, %v936, 0
    %940 = vmatpush.msra.mxu0 0.0
    %941 = vmatpush.msra.mxu0 0.0
    %942 = vmatpush.msra.mxu0 0.0
    %943 = vmatpush.msra.mxu0 0.0
    %944 = vmatpush.msra.mxu0 0.0
    %945 = vmatpush.msra.mxu0 0.0
    %946 = vmatpush.msra.mxu0 0.0
    %947 = vmatpush.msra.mxu0 0.0
    %948 = vmatpush.msra.mxu0 0.0
    %949 = vmatpush.msra.mxu0 %v938
    %950 = vmatpush.msra.mxu0 %v935
    %951 = vmatpush.msra.mxu0 %v934
    %952 = vmatpush.msra.mxu0 %v933
    %953 = vmatpush.msra.mxu0 %v932
    %954 = vmatpush.msra.mxu0 %v931
    %955 = vmatpush.msra.mxu0 %v930
    %956 = vmatmul.f32.gmra.mxu0 %v861
    %v957 = vpop.f32.mrf.mxu0
    %v958 = vadd.f32 0.0, %v957
    %959 = vdwg.mxu0
    %v960 = vld [vmem:[#allocation4 + $0x104] sm:$0xf]
    %v961 = vld [vmem:[#allocation4 + $0x108] sm:$0xf]
    %v962 = vld [vmem:[#allocation4 + $0x10c] sm:$0xf]
    %v963 = vld [vmem:[#allocation4 + $0x110] sm:$0xf]
    %v964 = vld [vmem:[#allocation4 + $0x114] sm:$0xf]
    %v965 = vld [vmem:[#allocation4 + $0x118] sm:$0xf]
    %v966 = vld [vmem:[#allocation4 + $0x11c] sm:$0x7]
    %v967 = vunpack.c.l.bf16 %v960
    %v968 = vunpack.c.l.bf16 %v961
    %v969 = vunpack.c.l.bf16 %v962
    %v970 = vunpack.c.l.bf16 %v963
    %v971 = vunpack.c.l.bf16 %v964
    %v972 = vunpack.c.l.bf16 %v965
    %v973 = vunpack.c.l.bf16 %v966
    %v975 = vsel %vm481, %v973, 0
    %977 = vmatpush.msra.mxu0 0.0
    %978 = vmatpush.msra.mxu0 0.0
    %979 = vmatpush.msra.mxu0 0.0
    %980 = vmatpush.msra.mxu0 0.0
    %981 = vmatpush.msra.mxu0 0.0
    %982 = vmatpush.msra.mxu0 0.0
    %983 = vmatpush.msra.mxu0 0.0
    %984 = vmatpush.msra.mxu0 0.0
    %985 = vmatpush.msra.mxu0 0.0
    %986 = vmatpush.msra.mxu0 %v975
    %987 = vmatpush.msra.mxu0 %v972
    %988 = vmatpush.msra.mxu0 %v971
    %989 = vmatpush.msra.mxu0 %v970
    %990 = vmatpush.msra.mxu0 %v969
    %991 = vmatpush.msra.mxu0 %v968
    %992 = vmatpush.msra.mxu0 %v967
    %993 = vmatmul.f32.gmra.mxu0 %v861
    %v994 = vpop.f32.mrf.mxu0
    %v995 = vadd.f32 0.0, %v994
    %996 = vdwg.mxu0
    %v997 = vld [vmem:[#allocation2 + $0x90] sm:$0xff]
    %v998 = vld [vmem:[#allocation2 + $0xa0] sm:$0xff]
    %v999 = vld [vmem:[#allocation2 + $0x98] sm:$0xff]
    %v1000 = vld [vmem:[#allocation2 + $0xa8] sm:$0xff]
    %1002 = vset.pattern.permute.xlu0 0
    %1003 = vperm.xlu0 %1002, %v999
    %v1004 = vpop.permute.xlu0 %1003
    %1007 = vset.pattern.permute.xlu0 0
    %1008 = vperm.xlu0 %1007, %v1000
    %v1009 = vpop.permute.xlu0 %1008
    %vm1011 = vcmask 261120
    %v1013 = vsel %vm1011, %v997, 0
    %v1016 = vsel %vm1011, %v998, 0
    %1018 = vmatpush.msra.mxu0 0.0
    %1019 = vmatpush.msra.mxu0 0.0
    %1020 = vmatpush.msra.mxu0 0.0
    %1021 = vmatpush.msra.mxu0 0.0
    %1022 = vmatpush.msra.mxu0 0.0
    %1023 = vmatpush.msra.mxu0 0.0
    %1024 = vmatpush.msra.mxu0 0.0
    %1025 = vmatpush.msra.mxu0 0.0
    %1026 = vmatpush.msra.mxu0 0.0
    %1027 = vmatpush.msra.mxu0 0.0
    %1028 = vmatpush.msra.mxu0 0.0
    %1029 = vmatpush.msra.mxu0 0.0
    %1030 = vmatpush.msra.mxu0 %v995
    %1031 = vmatpush.msra.mxu0 %v958
    %1032 = vmatpush.msra.mxu0 %v921
    %1033 = vmatpush.msra.mxu0 %v884
    %1034 = vmatmul.f32.gmra.mxu0 %v1013
    %v1035 = vpop.f32.mrf.mxu0
    %v1036 = vadd.f32 %v1004, %v1035
    %1037 = vmatmul.f32.gmra.mxu0 %v1016
    %v1038 = vpop.f32.mrf.mxu0
    %v1039 = vadd.f32 %v1009, %v1038
    %1040 = vdwg.mxu0
    %v1041 = vmul.f32 %v1036, 0.5
    %v1042 = vmul.f32 %v1039, 0.5
    %v1043 = vtanh.pop %v1041
    %v1044 = vtanh.pop %v1042
    %v1045 = vmul.f32 %v1043, 0.5
    %v1046 = vmul.f32 %v1044, 0.5
    %v1047 = vadd.f32 %v1045, 0.5
    %v1048 = vadd.f32 %v1046, 0.5
    %1049 = vst [vmem:[%s3] sm:$0xff] %v1047
    %1050 = vst [vmem:[%s3 + $0x8] sm:$0xff] %v1048
    // Predicated region
    $region22: #{forward.1} parent=1 // pred_check
      _
    $region23: #{forward.1} parent=1 // pred_check_branch
      %1052 = sbr.rel (0) target = $region25
    $region24: #{forward.1} parent=1 // pred_region
      _
    $region25: #{forward.1} parent=1 // pred_fallthru
      _
    // Predicated region
    $region26: #{forward.1} parent=1 // pred_check
      _
    $region27: #{forward.1} parent=1 // pred_check_branch
      %1054 = sbr.rel (0) target = $region29
    $region28: #{forward.1} parent=1 // pred_region
      _
    $region29: #{forward.1} parent=1 // pred_fallthru
      _
    %1055 = vsyncpa [#allocation3], 1
    %1056 = vsyncpa [#allocation5], 1

</llo_original>
